<compile_context>
chip_gen: v5e
topology: v5e:2x2
jax: 0.10.0
libtpu: 0.0.40
codegen_flags: <defaults>
</compile_context>

<pallas_src>
import jax
import jax.numpy as jnp
from jax.experimental import pallas as pl
from jax.experimental.pallas import tpu as pltpu


def gca_kernel(xh_ref, xl_ref, gate_ref, hp_ref, hn_ref, wr_ref, w3_ref, sh_ref,
               o_ref):
    """One (batch, L-tile) per grid step; NCL layout (channels x length).

    xh_ref  : (1, C_high, TL)   high-level features (current L tile)
    xl_ref  : (1, C_low,  TL)   low-level features  (current L tile)
    gate_ref: (1, C_low, 1)     precomputed relu(bn_high(conv1x1(GAP(xh)))), f32
    hp_ref  : (1, 1, C_low, 1)  x[tile_start - 1] halo column (zeros at L edge)
    hn_ref  : (1, 1, C_low, 1)  x[tile_end]       halo column (zeros at L edge)
    wr_ref  : (C_low, C_high)   conv_reduction weight, BN scale folded in
    w3_ref  : (3, C_low, C_low) conv3x3 taps, BN scale folded in
    sh_ref  : (C_low, 2)        BN shifts, columns [reduction, low]
    o_ref   : (1, C_low, TL)
    """
    c_low = o_ref.shape[1]
    tl = o_ref.shape[2]

    xh = xh_ref[0]                                         # (C_high, TL)
    xl = xl_ref[0]                                         # (C_low,  TL)
    hp = hp_ref[0, 0]                                      # (C_low, 1)
    hn = hn_ref[0, 0]                                      # (C_low, 1)

    # --- reduction path: BN scale already folded into wr; add shift only ---
    r = jnp.dot(wr_ref[...], xh, preferred_element_type=jnp.float32)  # (C_low, TL)
    r = r + sh_ref[:, 0:1]

    # --- conv3x3 (padding=1): shifted operands via XLU roll + boundary fix ---
    if tl % 128 == 0:
        lane = jax.lax.broadcasted_iota(jnp.int32, (1, tl), 1)
        x_prev = jnp.where(lane == 0, hp, pltpu.roll(xl, 1, 1))
        x_next = jnp.where(lane == tl - 1, hn, pltpu.roll(xl, tl - 1, 1))
    else:
        # tiny / lane-unaligned tiles (demo sizes): concatenate fallback
        x_prev = jnp.concatenate([hp, xl[:, : tl - 1]], axis=1)
        x_next = jnp.concatenate([xl[:, 1:], hn], axis=1)

    m = jnp.dot(w3_ref[0], x_prev, preferred_element_type=jnp.float32)
    m = m + jnp.dot(w3_ref[1], xl, preferred_element_type=jnp.float32)
    m = m + jnp.dot(w3_ref[2], x_next, preferred_element_type=jnp.float32)
    m = m + sh_ref[:, 1:2]

    # --- relu(reduction + low_mask * high_gate) ---
    g = gate_ref[0]                                        # (C_low, 1), f32
    o_ref[0] = jnp.maximum(r + m * g, 0.0).astype(o_ref.dtype)


def _bn_fold(p, eps):
    scale = p["gamma"] / jnp.sqrt(p["var"] + eps)
    shift = p["beta"] - p["mean"] * scale
    return scale, shift


def _pick_tile_l(L, max_tile=2048):
    """Largest multiple-of-128 divisor of L that is <= max_tile, else whole L."""
    if L % 128 != 0:
        return L
    best = 128
    for t in range(128, min(L, max_tile) + 1, 128):
        if L % t == 0:
            best = t
    return best


@jax.jit
def gca_forward(fms_high, fms_low, params, eps=1e-5):
    """fms_high: (B, C_high, L), fms_low: (B, C_low, L) — PyTorch NCL layout.

    Matmuls run in the activations' dtype (pass bf16 tensors for bf16 DMA/MXU);
    accumulation and the BN/ReLU epilogue are f32.  Note: with bf16 activations
    the 1e-4 tolerance against the f32 reference will not hold (expected).
    """
    B, C_high, L = fms_high.shape
    C_low = fms_low.shape[1]
    act_dtype = fms_high.dtype

    s_red, t_red = _bn_fold(params["bn_red"], eps)
    s_high, t_high = _bn_fold(params["bn_high"], eps)
    s_low, t_low = _bn_fold(params["bn_low"], eps)

    # BN scales folded into the conv weights; the kernel only adds shifts.
    wr = (params["wr"][:, :, 0] * s_red[:, None]).astype(act_dtype)  # (C_low, C_high)
    w3 = (jnp.transpose(params["w3"], (2, 0, 1))                      # (3, C_out, C_in)
          * s_low[None, :, None]).astype(act_dtype)
    shifts = jnp.stack([t_red, t_low], axis=1).astype(jnp.float32)    # (C_low, 2)

    # Gate path (exactly what the PyTorch module does: GAP over L, then
    # conv1x1 + BN + ReLU on the pooled (B, C_high, 1) tensor).  Tiny; done
    # once per batch in f32 and passed to the kernel.
    w1 = params["w1"][:, :, 0] * s_high[:, None]
    xh_mean = jnp.mean(fms_high.astype(jnp.float32), axis=2, keepdims=True)
    gate = jax.nn.relu(jnp.einsum("oc,bcl->bol", w1, xh_mean)
                       + t_high[None, :, None]).astype(jnp.float32)   # (B, C_low, 1)

    # L tiling + cross-tile conv3 halo columns (tiny (B, nT, C_low, 1) arrays).
    TL = _pick_tile_l(L)
    nT = L // TL
    last_cols = fms_low[:, :, TL - 1::TL]                    # x at the end of each tile
    first_cols = fms_low[:, :, 0::TL]                        # x at the start of each tile
    zcol = jnp.zeros_like(first_cols[:, :, :1])
    hp = jnp.concatenate([zcol, last_cols[:, :, : nT - 1]], axis=2)   # x[t*TL - 1]
    hn = jnp.concatenate([first_cols[:, :, 1:], zcol], axis=2)        # x[(t+1)*TL]
    hp = jnp.transpose(hp, (0, 2, 1))[..., None].astype(act_dtype)    # (B, nT, C_low, 1)
    hn = jnp.transpose(hn, (0, 2, 1))[..., None].astype(act_dtype)

    # VMEM budget from the real block footprint; cap well under v7x's 64 MiB.
    itemsize = jnp.dtype(act_dtype).itemsize
    blk = (C_high + 2 * C_low) * TL * itemsize               # xh + xl + out blocks
    wgt = (C_high * C_low + 3 * C_low * C_low) * itemsize
    f32_work = 4 * C_low * TL * 4
    need = 2 * blk + 2 * wgt + f32_work + (1 << 20)
    vmem_limit = int(min(max(need, 8 << 20), 48 << 20))

    out = pl.pallas_call(
        gca_kernel,
        out_shape=jax.ShapeDtypeStruct((B, C_low, L), act_dtype),
        grid_spec=pltpu.PrefetchScalarGridSpec(
            num_scalar_prefetch=0,
            grid=(B, nT),
            in_specs=[
                pl.BlockSpec((1, C_high, TL), lambda b, t: (b, 0, t)),
                pl.BlockSpec((1, C_low, TL), lambda b, t: (b, 0, t)),
                pl.BlockSpec((1, C_low, 1), lambda b, t: (b, 0, 0)),
                pl.BlockSpec((1, 1, C_low, 1), lambda b, t: (b, t, 0, 0)),
                pl.BlockSpec((1, 1, C_low, 1), lambda b, t: (b, t, 0, 0)),
                pl.BlockSpec((C_low, C_high), lambda b, t: (0, 0)),
                pl.BlockSpec((3, C_low, C_low), lambda b, t: (0, 0, 0)),
                pl.BlockSpec((C_low, 2), lambda b, t: (0, 0)),
            ],
            out_specs=pl.BlockSpec((1, C_low, TL), lambda b, t: (b, 0, t)),
        ),
        compiler_params=pltpu.CompilerParams(
            dimension_semantics=("parallel", "parallel"),
            vmem_limit_bytes=vmem_limit,
        ),
    )(fms_high, fms_low, gate, hp, hn, wr, w3, shifts)
    # Output is already PyTorch NCL: (B, C_low, L).
    return out


def gca_reference(fms_high, fms_low, params, eps=1e-5):
    """Pure-JAX reference matching the PyTorch forward (eval-mode BN)."""
    def bn(x, p):  # x: (B, C, L)
        s, t = _bn_fold(p, eps)
        return x * s[None, :, None] + t[None, :, None]

    gp = jnp.mean(fms_high, axis=2, keepdims=True)                        # (B, C_high, 1)
    g = jnp.einsum("oc,bcl->bol", params["w1"][:, :, 0], gp)              # (B, C_low, 1)
    g = jax.nn.relu(bn(g, params["bn_high"]))

    L = fms_low.shape[2]
    xlp = jnp.pad(fms_low, ((0, 0), (0, 0), (1, 1)))
    m = sum(jnp.einsum("oc,bcl->bol", params["w3"][:, :, k], xlp[:, :, k:k + L])
            for k in range(3))
    m = bn(m, params["bn_low"])

    r = bn(jnp.einsum("oc,bcl->bol", params["wr"][:, :, 0], fms_high),
           params["bn_red"])
    return jax.nn.relu(r + m * g)


def init_params(key, channels_high, channels_low):
    ks = jax.random.split(key, 12)
    def bn_params(k1, k2):
        return {
            "gamma": 1.0 + 0.1 * jax.random.normal(k1, (channels_low,), jnp.float32),
            "beta": 0.1 * jax.random.normal(k2, (channels_low,), jnp.float32),
            "mean": 0.05 * jax.random.normal(k1, (channels_low,), jnp.float32),
            "var": 1.0 + 0.1 * jax.random.uniform(k2, (channels_low,), jnp.float32),
        }
    return {
        "w3": 0.1 * jax.random.normal(ks[0], (channels_low, channels_low, 3), jnp.float32),
        "w1": 0.1 * jax.random.normal(ks[1], (channels_low, channels_high, 1), jnp.float32),
        "wr": 0.1 * jax.random.normal(ks[2], (channels_low, channels_high, 1), jnp.float32),
        "bn_low": bn_params(ks[3], ks[4]),
        "bn_high": bn_params(ks[5], ks[6]),
        "bn_red": bn_params(ks[7], ks[8]),
    }


def _run_case(B, C_HIGH, C_LOW, L, key):
    k_h, k_l, k_p = jax.random.split(key, 3)
    fms_high = jax.random.normal(k_h, (B, C_HIGH, L), jnp.float32)
    fms_low = jax.random.normal(k_l, (B, C_LOW, L), jnp.float32)
    params = init_params(k_p, C_HIGH, C_LOW)

    out = jax.block_until_ready(gca_forward(fms_high, fms_low, params))
    ref = gca_reference(fms_high, fms_low, params)
    assert out.shape == (B, C_LOW, L), out.shape
    err = float(jnp.max(jnp.abs(out - ref)))
    assert jnp.allclose(out, ref, atol=1e-4, rtol=1e-4), err


if __name__ == "__main__":
    # Small shapes: whole-L tile, concatenate halo path.
    _run_case(2, 8, 4, 16, jax.random.PRNGKey(0))
    # 128-aligned L with two L-tiles: pltpu.roll halo path + cross-tile halo columns.
    _run_case(2, 16, 8, 4096, jax.random.PRNGKey(1))

    print("KERNEL_OK")
</pallas_src>

<mosaic_0001>
module attributes {stable_mosaic.version = 11 : i64} {
  func.func @gca_kernel(%arg0: i32, %arg1: i32, %arg2: memref<1x8x16xf32, #tpu.memory_space<vmem>>, %arg3: memref<1x4x16xf32, #tpu.memory_space<vmem>>, %arg4: memref<1x4x1xf32, #tpu.memory_space<vmem>>, %arg5: memref<1x1x4x1xf32, #tpu.memory_space<vmem>>, %arg6: memref<1x1x4x1xf32, #tpu.memory_space<vmem>>, %arg7: memref<4x8xf32, #tpu.memory_space<vmem>>, %arg8: memref<3x4x4xf32, #tpu.memory_space<vmem>>, %arg9: memref<4x2xf32, #tpu.memory_space<vmem>>, %arg10: memref<1x4x16xf32, #tpu.memory_space<vmem>>) attributes {dimension_semantics = [#tpu.dimension_semantics<parallel>, #tpu.dimension_semantics<parallel>], iteration_bounds = array<i64: 2, 1>, scalar_prefetch = 0 : i64, scratch_operands = 0 : i64, tpu.core_type = #tpu.core_type<tc>, window_params = [{transform_indices = @transform_0, window_bounds = array<i64: 1, 8, 16>}, {transform_indices = @transform_1, window_bounds = array<i64: 1, 4, 16>}, {transform_indices = @transform_2, window_bounds = array<i64: 1, 4, 1>}, {transform_indices = @transform_3, window_bounds = array<i64: 1, 1, 4, 1>}, {transform_indices = @transform_4, window_bounds = array<i64: 1, 1, 4, 1>}, {pipeline_mode = #tpu.pipeline_mode<synchronous>, transform_indices = @transform_5, window_bounds = array<i64: 4, 8>}, {pipeline_mode = #tpu.pipeline_mode<synchronous>, transform_indices = @transform_6, window_bounds = array<i64: 3, 4, 4>}, {pipeline_mode = #tpu.pipeline_mode<synchronous>, transform_indices = @transform_7, window_bounds = array<i64: 4, 2>}, {transform_indices = @transform_8, window_bounds = array<i64: 1, 4, 16>}]} {
    %c0 = arith.constant 0 : index
    %c0_0 = arith.constant 0 : index
    %c0_1 = arith.constant 0 : index
    %0 = vector.load %arg2[%c0, %c0_0, %c0_1] : memref<1x8x16xf32, #tpu.memory_space<vmem>>, vector<1x8x16xf32>
    %1 = vector.shape_cast %0 : vector<1x8x16xf32> to vector<8x16xf32>
    %c0_2 = arith.constant 0 : index
    %c0_3 = arith.constant 0 : index
    %c0_4 = arith.constant 0 : index
    %2 = vector.load %arg3[%c0_2, %c0_3, %c0_4] : memref<1x4x16xf32, #tpu.memory_space<vmem>>, vector<1x4x16xf32>
    %3 = vector.shape_cast %2 : vector<1x4x16xf32> to vector<4x16xf32>
    %c0_5 = arith.constant 0 : index
    %c0_6 = arith.constant 0 : index
    %c0_7 = arith.constant 0 : index
    %c0_8 = arith.constant 0 : index
    %4 = vector.load %arg5[%c0_5, %c0_6, %c0_7, %c0_8] : memref<1x1x4x1xf32, #tpu.memory_space<vmem>>, vector<1x1x4x1xf32>
    %5 = vector.shape_cast %4 : vector<1x1x4x1xf32> to vector<4x1xf32>
    %c0_9 = arith.constant 0 : index
    %c0_10 = arith.constant 0 : index
    %c0_11 = arith.constant 0 : index
    %c0_12 = arith.constant 0 : index
    %6 = vector.load %arg6[%c0_9, %c0_10, %c0_11, %c0_12] : memref<1x1x4x1xf32, #tpu.memory_space<vmem>>, vector<1x1x4x1xf32>
    %7 = vector.shape_cast %6 : vector<1x1x4x1xf32> to vector<4x1xf32>
    %c0_13 = arith.constant 0 : index
    %c0_14 = arith.constant 0 : index
    %8 = vector.load %arg7[%c0_13, %c0_14] : memref<4x8xf32, #tpu.memory_space<vmem>>, vector<4x8xf32>
    %cst = arith.constant dense<0.000000e+00> : vector<4x16xf32>
    %9 = tpu.matmul %8, %1, %cst {dimension_numbers = #tpu.dot_dimension_numbers<[1], [0], [0], [1], [0, 0, 1, 1], [], []>} : vector<4x8xf32>, vector<8x16xf32>, vector<4x16xf32> -> vector<4x16xf32>
    %c0_15 = arith.constant 0 : index
    %c0_16 = arith.constant 0 : index
    %10 = vector.load %arg9[%c0_15, %c0_16] : memref<4x2xf32, #tpu.memory_space<vmem>>, vector<4x1xf32>
    %11 = vector.broadcast %10 : vector<4x1xf32> to vector<4x16xf32>
    %12 = arith.addf %9, %11 : vector<4x16xf32>
    %13 = vector.extract_strided_slice %3 {offsets = [0, 0], sizes = [4, 15], strides = [1, 1]} : vector<4x16xf32> to vector<4x15xf32>
    %14 = tpu.concatenate %5, %13 in 1 : vector<4x1xf32>, vector<4x15xf32> -> vector<4x16xf32>
    %15 = vector.extract_strided_slice %3 {offsets = [0, 1], sizes = [4, 15], strides = [1, 1]} : vector<4x16xf32> to vector<4x15xf32>
    %16 = tpu.concatenate %15, %7 in 1 : vector<4x15xf32>, vector<4x1xf32> -> vector<4x16xf32>
    %c0_17 = arith.constant 0 : index
    %c0_18 = arith.constant 0 : index
    %c0_19 = arith.constant 0 : index
    %17 = vector.load %arg8[%c0_17, %c0_18, %c0_19] : memref<3x4x4xf32, #tpu.memory_space<vmem>>, vector<1x4x4xf32>
    %18 = vector.shape_cast %17 : vector<1x4x4xf32> to vector<4x4xf32>
    %cst_20 = arith.constant dense<0.000000e+00> : vector<4x16xf32>
    %19 = tpu.matmul %18, %14, %cst_20 {dimension_numbers = #tpu.dot_dimension_numbers<[1], [0], [0], [1], [0, 0, 1, 1], [], []>} : vector<4x4xf32>, vector<4x16xf32>, vector<4x16xf32> -> vector<4x16xf32>
    %c1 = arith.constant 1 : index
    %c0_21 = arith.constant 0 : index
    %c0_22 = arith.constant 0 : index
    %20 = vector.load %arg8[%c1, %c0_21, %c0_22] : memref<3x4x4xf32, #tpu.memory_space<vmem>>, vector<1x4x4xf32>
    %21 = vector.shape_cast %20 : vector<1x4x4xf32> to vector<4x4xf32>
    %cst_23 = arith.constant dense<0.000000e+00> : vector<4x16xf32>
    %22 = tpu.matmul %21, %3, %cst_23 {dimension_numbers = #tpu.dot_dimension_numbers<[1], [0], [0], [1], [0, 0, 1, 1], [], []>} : vector<4x4xf32>, vector<4x16xf32>, vector<4x16xf32> -> vector<4x16xf32>
    %23 = arith.addf %19, %22 : vector<4x16xf32>
    %c2 = arith.constant 2 : index
    %c0_24 = arith.constant 0 : index
    %c0_25 = arith.constant 0 : index
    %24 = vector.load %arg8[%c2, %c0_24, %c0_25] : memref<3x4x4xf32, #tpu.memory_space<vmem>>, vector<1x4x4xf32>
    %25 = vector.shape_cast %24 : vector<1x4x4xf32> to vector<4x4xf32>
    %cst_26 = arith.constant dense<0.000000e+00> : vector<4x16xf32>
    %26 = tpu.matmul %25, %16, %cst_26 {dimension_numbers = #tpu.dot_dimension_numbers<[1], [0], [0], [1], [0, 0, 1, 1], [], []>} : vector<4x4xf32>, vector<4x16xf32>, vector<4x16xf32> -> vector<4x16xf32>
    %27 = arith.addf %23, %26 : vector<4x16xf32>
    %c0_27 = arith.constant 0 : index
    %c1_28 = arith.constant 1 : index
    %28 = vector.load %arg9[%c0_27, %c1_28] : memref<4x2xf32, #tpu.memory_space<vmem>>, vector<4x1xf32>
    %29 = vector.broadcast %28 : vector<4x1xf32> to vector<4x16xf32>
    %30 = arith.addf %27, %29 : vector<4x16xf32>
    %c0_29 = arith.constant 0 : index
    %c0_30 = arith.constant 0 : index
    %c0_31 = arith.constant 0 : index
    %31 = vector.load %arg4[%c0_29, %c0_30, %c0_31] : memref<1x4x1xf32, #tpu.memory_space<vmem>>, vector<1x4x1xf32>
    %32 = vector.shape_cast %31 : vector<1x4x1xf32> to vector<4x1xf32>
    %33 = vector.broadcast %32 : vector<4x1xf32> to vector<4x16xf32>
    %34 = arith.mulf %30, %33 : vector<4x16xf32>
    %35 = arith.addf %12, %34 : vector<4x16xf32>
    %cst_32 = arith.constant 0.000000e+00 : f32
    %36 = vector.broadcast %cst_32 : f32 to vector<4x16xf32>
    %37 = arith.maximumf %35, %36 : vector<4x16xf32>
    %c0_33 = arith.constant 0 : index
    %c0_34 = arith.constant 0 : index
    %c0_35 = arith.constant 0 : index
    %38 = vector.load %arg10[%c0_33, %c0_34, %c0_35] : memref<1x4x16xf32, #tpu.memory_space<vmem>>, vector<1x4x16xf32>
    %39 = vector.shape_cast %38 : vector<1x4x16xf32> to vector<4x16xf32>
    %40 = vector.shape_cast %37 : vector<4x16xf32> to vector<1x4x16xf32>
    tpu.vector_store %arg10[%c0_33, %c0_34, %c0_35], %40 {strides = array<i32>} : memref<1x4x16xf32, #tpu.memory_space<vmem>>, vector<1x4x16xf32>,
    return
  }
  func.func @transform_0(%arg0: i32, %arg1: i32) -> (i32, i32, i32) {
    %c0_i32 = arith.constant 0 : i32
    %c0_i32_0 = arith.constant 0 : i32
    return %arg0, %c0_i32, %arg1 : i32, i32, i32
  }
  func.func @transform_1(%arg0: i32, %arg1: i32) -> (i32, i32, i32) {
    %c0_i32 = arith.constant 0 : i32
    %c0_i32_0 = arith.constant 0 : i32
    return %arg0, %c0_i32, %arg1 : i32, i32, i32
  }
  func.func @transform_2(%arg0: i32, %arg1: i32) -> (i32, i32, i32) {
    %c0_i32 = arith.constant 0 : i32
    %c0_i32_0 = arith.constant 0 : i32
    %c0_i32_1 = arith.constant 0 : i32
    return %arg0, %c0_i32, %c0_i32_0 : i32, i32, i32
  }
  func.func @transform_3(%arg0: i32, %arg1: i32) -> (i32, i32, i32, i32) {
    %c0_i32 = arith.constant 0 : i32
    %c0_i32_0 = arith.constant 0 : i32
    %c0_i32_1 = arith.constant 0 : i32
    return %arg0, %arg1, %c0_i32, %c0_i32_0 : i32, i32, i32, i32
  }
  func.func @transform_4(%arg0: i32, %arg1: i32) -> (i32, i32, i32, i32) {
    %c0_i32 = arith.constant 0 : i32
    %c0_i32_0 = arith.constant 0 : i32
    %c0_i32_1 = arith.constant 0 : i32
    return %arg0, %arg1, %c0_i32, %c0_i32_0 : i32, i32, i32, i32
  }
  func.func @transform_5(%arg0: i32, %arg1: i32) -> (i32, i32) {
    %c0_i32 = arith.constant 0 : i32
    %c0_i32_0 = arith.constant 0 : i32
    %c0_i32_1 = arith.constant 0 : i32
    return %c0_i32, %c0_i32_0 : i32, i32
  }
  func.func @transform_6(%arg0: i32, %arg1: i32) -> (i32, i32, i32) {
    %c0_i32 = arith.constant 0 : i32
    %c0_i32_0 = arith.constant 0 : i32
    %c0_i32_1 = arith.constant 0 : i32
    %c0_i32_2 = arith.constant 0 : i32
    return %c0_i32, %c0_i32_0, %c0_i32_1 : i32, i32, i32
  }
  func.func @transform_7(%arg0: i32, %arg1: i32) -> (i32, i32) {
    %c0_i32 = arith.constant 0 : i32
    %c0_i32_0 = arith.constant 0 : i32
    %c0_i32_1 = arith.constant 0 : i32
    return %c0_i32, %c0_i32_0 : i32, i32
  }
  func.func @transform_8(%arg0: i32, %arg1: i32) -> (i32, i32, i32) {
    %c0_i32 = arith.constant 0 : i32
    %c0_i32_0 = arith.constant 0 : i32
    return %arg0, %c0_i32, %arg1 : i32, i32, i32
  }
}

</mosaic_0001>

<llo_original>
// kernel: gca_forward.1
$region0: #{gca_forward.1}
  #allocation0 [shape = 'u32[]', space=smem, size = 0x4, offset = 0x4, fixed_abs, tag = 'smem constant byte address 0x4 - core index']
  #allocation1 [shape = 'u32[72,128]{1,0:T(1,128)}', space=vmem, size = 0x9000, scoped, tag = 'internal scratch']
  %s0 = inlined_call_operand.vmem [shape: f32[2,8,16], index: 0, kind: input, shape index: {}]
  %s1 = inlined_call_operand.vmem [shape: f32[2,4,16], index: 1, kind: input, shape index: {}]
  %s2 = inlined_call_operand.vmem [shape: f32[2,4,1], index: 2, kind: input, shape index: {}]
  %s3 = inlined_call_operand.vmem [shape: f32[2,1,4,1], index: 3, kind: input, shape index: {}, may-alias: {3,4}]
  %s4 = inlined_call_operand.vmem [shape: f32[2,1,4,1], index: 4, kind: input, shape index: {}, may-alias: {3,4}]
  %s5 = inlined_call_operand.vmem [shape: f32[4,8], index: 5, kind: input, shape index: {}]
  %s6 = inlined_call_operand.vmem [shape: f32[3,4,4], index: 6, kind: input, shape index: {}]
  %s7 = inlined_call_operand.vmem [shape: f32[4,2], index: 7, kind: input, shape index: {}]
  %s8 = inlined_call_operand.hbm [shape: f32[2,4,16], index: 8, kind: output, shape index: {}]
  %s9 = sld [smem:[#allocation0]]
  $region65: #{gca_forward.1} parent=0
    _
  %s11 = ssub.s32 1, %s9
  %s12 = scalar_select 0, %s11, %s9
  $region1: #{gca_forward.1} parent=0
    #allocation2 [shape = 'u8[4096]{0}', space=vmem, size = 0x1000, scoped, tag = 'output window, operand 0']
    #allocation3 [shape = 's32[2]{0}', space=sflag, size = 0x8, scoped, tag = 'scoped memory for gca_forward.1']
    %13 = vsyncpa [#allocation3], 0
    %s14 = scalar_lea.sflag [#allocation3], 1
    %15 = vsyncpa %s14, 0
    loop: start=0, step=1, limit=4
    $region2: #{gca_forward.1} parent=1 // loop_pre_header
      _
    $region3: #{gca_forward.1} parent=1 // loop_header
      %s17 = sphi 0, %s21
      %p18 = scmp.ge.s32.totalorder %s17, 4
      %s24 = sphi 0, %s36
      %s25 = sphi 0, %s32
      %s26 = sphi 0, %s24
      %s27 = sphi 0, %s25
      %s28 = sphi 0, %s26
      %s29 = sphi 0, %s27
      %s41 = sphi 0, %s43
      %s44 = sphi 0, %s41
      %s45 = sphi 0, %s44
      %s61 = sphi 0, %s45
      %s69 = sphi 0, %s71
      %s72 = sphi 0, %s69
      %s73 = sphi 0, %s72
      %s89 = sphi 0, %s73
      %s95 = sphi 0, %s97
      %s98 = sphi 0, %s95
      %s99 = sphi 0, %s98
      %s115 = sphi 0, %s99
      %s123 = sphi 0, %s125
      %s126 = sphi 0, %s123
      %s127 = sphi 0, %s126
      %s143 = sphi 0, %s127
      %s151 = sphi 0, %s153
      %s154 = sphi 0, %s151
      %s155 = sphi 0, %s154
      %s171 = sphi 0, %s155
      %s175 = sphi 0, %s175
      %s177 = sphi 0, %s175
      %s178 = sphi 0, %s177
      %s192 = sphi 0, %s178
      %s196 = sphi 0, %s196
      %s198 = sphi 0, %s196
      %s199 = sphi 0, %s198
      %s213 = sphi 0, %s199
      %s217 = sphi 0, %s217
      %s219 = sphi 0, %s217
      %s220 = sphi 0, %s219
      %s234 = sphi 0, %s220
      %s242 = sphi 0, %s244
      %s245 = sphi 0, %s242
      %s246 = sphi 0, %s245
      %s262 = sphi 0, %s246
    $region4: #{gca_forward.1} parent=1 // loop_header_branch
      %20 = sbr.rel (%p18) target = $region8
    $region5: #{gca_forward.1} parent=1 // loop_body
      %s22 = ssub.s32 %s17, 1
      %s23 = ssub.s32 %s17, 2
      %s30 = sadd.s32 1, %s25
      %p31 = scmp.ge.s32.totalorder %s30, 1
      %s32 = scalar_select %p31, 0, %s30
      %s33 = sadd.s32 1, %s24
      %s34 = scalar_select %p31, %s33, %s24
      %p35 = scmp.ge.s32.totalorder %s34, 2
      %s36 = scalar_select %p35, 0, %s34
      %s37 = ssub.s32 %s24, %s36
      %s38 = ssub.s32 %s25, %s32
      %s39 = sor.u32 %s37, %s38
      %p40 = scmp.eq.s32.totalorder %s39, 0
      %s42 = sadd.s32 %s41, 1
      %s43 = scalar_select %p40, %s41, %s42
      %p46 = pneg %p40
      %p47 = scmp.eq.s32.totalorder %s17, 1
      %p48 = por %p46, %p47
      %p49 = scmp.ne.s32.totalorder %s41, %s44
      %p50 = scmp.eq.s32.totalorder %s17, 0
      %p51 = por %p49, %p50
      %p52 = scmp.ne.s32.totalorder %s41, %s44
      %p53 = scmp.eq.s32.totalorder %s22, 1
      %p54 = por %p52, %p53
      %p55 = scmp.ne.s32.totalorder %s44, %s45
      %p56 = scmp.eq.s32.totalorder %s22, 0
      %p57 = por %p55, %p56
      %p58 = scmp.ne.s32.totalorder %s44, %s45
      %p59 = scmp.eq.s32.totalorder %s23, 1
      %p60 = por %p58, %p59
      %p62 = scmp.ne.s32.totalorder %s45, %s61
      %p63 = scmp.eq.s32.totalorder %s23, 0
      %p64 = por %p62, %p63
      %s65 = ssub.s32 %s24, %s36
      %s66 = ssub.s32 %s25, %s32
      %s67 = sor.u32 %s65, %s66
      %p68 = scmp.eq.s32.totalorder %s67, 0
      %s70 = sadd.s32 %s69, 1
      %s71 = scalar_select %p68, %s69, %s70
      %p74 = pneg %p68
      %p75 = scmp.eq.s32.totalorder %s17, 1
      %p76 = por %p74, %p75
      %p77 = scmp.ne.s32.totalorder %s69, %s72
      %p78 = scmp.eq.s32.totalorder %s17, 0
      %p79 = por %p77, %p78
      %p80 = scmp.ne.s32.totalorder %s69, %s72
      %p81 = scmp.eq.s32.totalorder %s22, 1
      %p82 = por %p80, %p81
      %p83 = scmp.ne.s32.totalorder %s72, %s73
      %p84 = scmp.eq.s32.totalorder %s22, 0
      %p85 = por %p83, %p84
      %p86 = scmp.ne.s32.totalorder %s72, %s73
      %p87 = scmp.eq.s32.totalorder %s23, 1
      %p88 = por %p86, %p87
      %p90 = scmp.ne.s32.totalorder %s73, %s89
      %p91 = scmp.eq.s32.totalorder %s23, 0
      %p92 = por %p90, %p91
      %s93 = ssub.s32 %s24, %s36
      %p94 = scmp.eq.s32.totalorder %s93, 0
      %s96 = sadd.s32 %s95, 1
      %s97 = scalar_select %p94, %s95, %s96
      %p100 = pneg %p94
      %p101 = scmp.eq.s32.totalorder %s17, 1
      %p102 = por %p100, %p101
      %p103 = scmp.ne.s32.totalorder %s95, %s98
      %p104 = scmp.eq.s32.totalorder %s17, 0
      %p105 = por %p103, %p104
      %p106 = scmp.ne.s32.totalorder %s95, %s98
      %p107 = scmp.eq.s32.totalorder %s22, 1
      %p108 = por %p106, %p107
      %p109 = scmp.ne.s32.totalorder %s98, %s99
      %p110 = scmp.eq.s32.totalorder %s22, 0
      %p111 = por %p109, %p110
      %p112 = scmp.ne.s32.totalorder %s98, %s99
      %p113 = scmp.eq.s32.totalorder %s23, 1
      %p114 = por %p112, %p113
      %p116 = scmp.ne.s32.totalorder %s99, %s115
      %p117 = scmp.eq.s32.totalorder %s23, 0
      %p118 = por %p116, %p117
      %s119 = ssub.s32 %s24, %s36
      %s120 = ssub.s32 %s25, %s32
      %s121 = sor.u32 %s119, %s120
      %p122 = scmp.eq.s32.totalorder %s121, 0
      %s124 = sadd.s32 %s123, 1
      %s125 = scalar_select %p122, %s123, %s124
      %p128 = pneg %p122
      %p129 = scmp.eq.s32.totalorder %s17, 1
      %p130 = por %p128, %p129
      %p131 = scmp.ne.s32.totalorder %s123, %s126
      %p132 = scmp.eq.s32.totalorder %s17, 0
      %p133 = por %p131, %p132
      %p134 = scmp.ne.s32.totalorder %s123, %s126
      %p135 = scmp.eq.s32.totalorder %s22, 1
      %p136 = por %p134, %p135
      %p137 = scmp.ne.s32.totalorder %s126, %s127
      %p138 = scmp.eq.s32.totalorder %s22, 0
      %p139 = por %p137, %p138
      %p140 = scmp.ne.s32.totalorder %s126, %s127
      %p141 = scmp.eq.s32.totalorder %s23, 1
      %p142 = por %p140, %p141
      %p144 = scmp.ne.s32.totalorder %s127, %s143
      %p145 = scmp.eq.s32.totalorder %s23, 0
      %p146 = por %p144, %p145
      %s147 = ssub.s32 %s24, %s36
      %s148 = ssub.s32 %s25, %s32
      %s149 = sor.u32 %s147, %s148
      %p150 = scmp.eq.s32.totalorder %s149, 0
      %s152 = sadd.s32 %s151, 1
      %s153 = scalar_select %p150, %s151, %s152
      %p156 = pneg %p150
      %p157 = scmp.eq.s32.totalorder %s17, 1
      %p158 = por %p156, %p157
      %p159 = scmp.ne.s32.totalorder %s151, %s154
      %p160 = scmp.eq.s32.totalorder %s17, 0
      %p161 = por %p159, %p160
      %p162 = scmp.ne.s32.totalorder %s151, %s154
      %p163 = scmp.eq.s32.totalorder %s22, 1
      %p164 = por %p162, %p163
      %p165 = scmp.ne.s32.totalorder %s154, %s155
      %p166 = scmp.eq.s32.totalorder %s22, 0
      %p167 = por %p165, %p166
      %p168 = scmp.ne.s32.totalorder %s154, %s155
      %p169 = scmp.eq.s32.totalorder %s23, 1
      %p170 = por %p168, %p169
      %p172 = scmp.ne.s32.totalorder %s155, %s171
      %p173 = scmp.eq.s32.totalorder %s23, 0
      %p174 = por %p172, %p173
      %s176 = sadd.s32 %s175, 1
      %p179 = scmp.eq.s32.totalorder %s17, 1
      %p180 = scmp.ne.s32.totalorder %s175, %s177
      %p181 = scmp.eq.s32.totalorder %s17, 0
      %p182 = por %p180, %p181
      %p183 = scmp.ne.s32.totalorder %s175, %s177
      %p184 = scmp.eq.s32.totalorder %s22, 1
      %p185 = por %p183, %p184
      %p186 = scmp.ne.s32.totalorder %s177, %s178
      %p187 = scmp.eq.s32.totalorder %s22, 0
      %p188 = por %p186, %p187
      %p189 = scmp.ne.s32.totalorder %s177, %s178
      %p190 = scmp.eq.s32.totalorder %s23, 1
      %p191 = por %p189, %p190
      %p193 = scmp.ne.s32.totalorder %s178, %s192
      %p194 = scmp.eq.s32.totalorder %s23, 0
      %p195 = por %p193, %p194
      %s197 = sadd.s32 %s196, 1
      %p200 = scmp.eq.s32.totalorder %s17, 1
      %p201 = scmp.ne.s32.totalorder %s196, %s198
      %p202 = scmp.eq.s32.totalorder %s17, 0
      %p203 = por %p201, %p202
      %p204 = scmp.ne.s32.totalorder %s196, %s198
      %p205 = scmp.eq.s32.totalorder %s22, 1
      %p206 = por %p204, %p205
      %p207 = scmp.ne.s32.totalorder %s198, %s199
      %p208 = scmp.eq.s32.totalorder %s22, 0
      %p209 = por %p207, %p208
      %p210 = scmp.ne.s32.totalorder %s198, %s199
      %p211 = scmp.eq.s32.totalorder %s23, 1
      %p212 = por %p210, %p211
      %p214 = scmp.ne.s32.totalorder %s199, %s213
      %p215 = scmp.eq.s32.totalorder %s23, 0
      %p216 = por %p214, %p215
      %s218 = sadd.s32 %s217, 1
      %p221 = scmp.eq.s32.totalorder %s17, 1
      %p222 = scmp.ne.s32.totalorder %s217, %s219
      %p223 = scmp.eq.s32.totalorder %s17, 0
      %p224 = por %p222, %p223
      %p225 = scmp.ne.s32.totalorder %s217, %s219
      %p226 = scmp.eq.s32.totalorder %s22, 1
      %p227 = por %p225, %p226
      %p228 = scmp.ne.s32.totalorder %s219, %s220
      %p229 = scmp.eq.s32.totalorder %s22, 0
      %p230 = por %p228, %p229
      %p231 = scmp.ne.s32.totalorder %s219, %s220
      %p232 = scmp.eq.s32.totalorder %s23, 1
      %p233 = por %p231, %p232
      %p235 = scmp.ne.s32.totalorder %s220, %s234
      %p236 = scmp.eq.s32.totalorder %s23, 0
      %p237 = por %p235, %p236
      %s238 = ssub.s32 %s24, %s36
      %s239 = ssub.s32 %s25, %s32
      %s240 = sor.u32 %s238, %s239
      %p241 = scmp.eq.s32.totalorder %s240, 0
      %s243 = sadd.s32 %s242, 1
      %s244 = scalar_select %p241, %s242, %s243
      %p247 = pneg %p241
      %p248 = scmp.eq.s32.totalorder %s17, 1
      %p249 = por %p247, %p248
      %p250 = scmp.ne.s32.totalorder %s242, %s245
      %p251 = scmp.eq.s32.totalorder %s17, 0
      %p252 = por %p250, %p251
      %p253 = scmp.ne.s32.totalorder %s242, %s245
      %p254 = scmp.eq.s32.totalorder %s22, 1
      %p255 = por %p253, %p254
      %p256 = scmp.ne.s32.totalorder %s245, %s246
      %p257 = scmp.eq.s32.totalorder %s22, 0
      %p258 = por %p256, %p257
      %p259 = scmp.ne.s32.totalorder %s245, %s246
      %p260 = scmp.eq.s32.totalorder %s23, 1
      %p261 = por %p259, %p260
      %p263 = scmp.ne.s32.totalorder %s246, %s262
      %p264 = scmp.eq.s32.totalorder %s23, 0
      %p265 = por %p263, %p264
      %p266 = scmp.le.s32.totalorder 1, %s17
      %p267 = scmp.lt.s32.totalorder %s17, 3
      %p268 = pnand %p266, %p267
      %p269 = pneg %p268
      // Predicated region
      $region9: #{gca_forward.1} parent=5 // pred_check
        _
      $region10: #{gca_forward.1} parent=5 // pred_check_branch
        %271 = sbr.rel (%p268) target = $region12
      $region11: #{gca_forward.1} parent=5 // pred_region
        %s272 = ssub.s32 %s17, 1
        // Predicated region
        $region13: #{gca_forward.1} parent=11 // pred_check
          %p273 = pneg %p188
        $region14: #{gca_forward.1} parent=11 // pred_check_branch
          %275 = sbr.rel (%p273) target = $region16
        $region15: #{gca_forward.1} parent=11 // pred_region
          _
        $region16: #{gca_forward.1} parent=11 // pred_fallthru
          _
        // Predicated region
        $region17: #{gca_forward.1} parent=11 // pred_check
          %p276 = pneg %p209
        $region18: #{gca_forward.1} parent=11 // pred_check_branch
          %278 = sbr.rel (%p276) target = $region20
        $region19: #{gca_forward.1} parent=11 // pred_region
          _
        $region20: #{gca_forward.1} parent=11 // pred_fallthru
          _
        // Predicated region
        $region21: #{gca_forward.1} parent=11 // pred_check
          %p279 = pneg %p230
        $region22: #{gca_forward.1} parent=11 // pred_check_branch
          %281 = sbr.rel (%p279) target = $region24
        $region23: #{gca_forward.1} parent=11 // pred_region
          _
        $region24: #{gca_forward.1} parent=11 // pred_fallthru
          _
      $region12: #{gca_forward.1} parent=5 // pred_fallthru
        _
      %p282 = scmp.lt.s32.totalorder %s17, 2
      // Predicated region
      $region25: #{gca_forward.1} parent=5 // pred_check
        %p283 = pneg %p282
      $region26: #{gca_forward.1} parent=5 // pred_check_branch
        %285 = sbr.rel (%p283) target = $region28
      $region27: #{gca_forward.1} parent=5 // pred_region
        // Predicated region
        $region29: #{gca_forward.1} parent=27 // pred_check
          %p286 = pneg %p51
        $region30: #{gca_forward.1} parent=27 // pred_check_branch
          %288 = sbr.rel (%p286) target = $region32
        $region31: #{gca_forward.1} parent=27 // pred_region
          %p289 = scmp.lt.s32.totalorder %s24, 1
          %s290 = scalar_select %p289, %s24, 1
          %p291 = scmp.lt.s32.totalorder %s25, 0
          %s292 = scalar_select %p291, %s25, 0
          %s293 = sadd.s32 %s292, %s290
          %s294 = smul.addr %s293, 8
          %s295 = scalar_lea.vmem %s0, %s294
        $region32: #{gca_forward.1} parent=27 // pred_fallthru
          _
        // Predicated region
        $region33: #{gca_forward.1} parent=27 // pred_check
          %p296 = pneg %p79
        $region34: #{gca_forward.1} parent=27 // pred_check_branch
          %298 = sbr.rel (%p296) target = $region36
        $region35: #{gca_forward.1} parent=27 // pred_region
          %p299 = scmp.lt.s32.totalorder %s24, 1
          %s300 = scalar_select %p299, %s24, 1
          %p301 = scmp.lt.s32.totalorder %s25, 0
          %s302 = scalar_select %p301, %s25, 0
          %s303 = sadd.s32 %s302, %s300
          %s304 = smul.addr %s303, 4
          %s305 = scalar_lea.vmem %s1, %s304
        $region36: #{gca_forward.1} parent=27 // pred_fallthru
          _
        // Predicated region
        $region37: #{gca_forward.1} parent=27 // pred_check
          %p306 = pneg %p105
        $region38: #{gca_forward.1} parent=27 // pred_check_branch
          %308 = sbr.rel (%p306) target = $region40
        $region39: #{gca_forward.1} parent=27 // pred_region
          %p309 = scmp.lt.s32.totalorder %s24, 1
          %s310 = scalar_select %p309, %s24, 1
          %s311 = smul.addr %s310, 4
          %s312 = scalar_lea.vmem %s2, %s311
        $region40: #{gca_forward.1} parent=27 // pred_fallthru
          _
        // Predicated region
        $region41: #{gca_forward.1} parent=27 // pred_check
          %p313 = pneg %p133
        $region42: #{gca_forward.1} parent=27 // pred_check_branch
          %315 = sbr.rel (%p313) target = $region44
        $region43: #{gca_forward.1} parent=27 // pred_region
          %p316 = scmp.lt.s32.totalorder %s24, 1
          %s317 = scalar_select %p316, %s24, 1
          %p318 = scmp.lt.s32.totalorder %s25, 0
          %s319 = scalar_select %p318, %s25, 0
          %s320 = sadd.s32 %s319, %s317
          %s321 = smul.addr %s320, 4
          %s322 = scalar_lea.vmem %s3, %s321
        $region44: #{gca_forward.1} parent=27 // pred_fallthru
          _
        // Predicated region
        $region45: #{gca_forward.1} parent=27 // pred_check
          %p323 = pneg %p161
        $region46: #{gca_forward.1} parent=27 // pred_check_branch
          %325 = sbr.rel (%p323) target = $region48
        $region47: #{gca_forward.1} parent=27 // pred_region
          %p326 = scmp.lt.s32.totalorder %s24, 1
          %s327 = scalar_select %p326, %s24, 1
          %p328 = scmp.lt.s32.totalorder %s25, 0
          %s329 = scalar_select %p328, %s25, 0
          %s330 = sadd.s32 %s329, %s327
          %s331 = smul.addr %s330, 4
          %s332 = scalar_lea.vmem %s4, %s331
        $region48: #{gca_forward.1} parent=27 // pred_fallthru
          _
      $region28: #{gca_forward.1} parent=5 // pred_fallthru
        _
      %p333 = scmp.le.s32.totalorder 1, %s17
      %p334 = scmp.lt.s32.totalorder %s17, 3
      %p335 = pnand %p333, %p334
      %p336 = pneg %p335
      // Predicated region
      $region49: #{gca_forward.1} parent=5 // pred_check
        _
      $region50: #{gca_forward.1} parent=5 // pred_check_branch
        %338 = sbr.rel (%p335) target = $region52
      $region51: #{gca_forward.1} parent=5 // pred_region
        %s339 = ssub.s32 %s17, 1
        %p340 = scmp.lt.s32.totalorder %s26, 1
        %s341 = scalar_select %p340, %s26, 1
        %p342 = scmp.lt.s32.totalorder %s27, 0
        %s343 = scalar_select %p342, %s27, 0
        %s344 = sadd.s32 %s343, %s341
        %s345 = smul.addr %s344, 8
        %s346 = scalar_lea.vmem %s0, %s345
        %p347 = pneg %p57
        %p348 = pneg %p54
        %p349 = scmp.lt.s32.totalorder %s26, 1
        %s350 = scalar_select %p349, %s26, 1
        %p351 = scmp.lt.s32.totalorder %s27, 0
        %s352 = scalar_select %p351, %s27, 0
        %s353 = sadd.s32 %s352, %s350
        %s354 = smul.addr %s353, 4
        %s355 = scalar_lea.vmem %s1, %s354
        %p356 = pneg %p85
        %p357 = pneg %p82
        %p358 = scmp.lt.s32.totalorder %s26, 1
        %s359 = scalar_select %p358, %s26, 1
        %s360 = smul.addr %s359, 4
        %s361 = scalar_lea.vmem %s2, %s360
        %p362 = pneg %p111
        %p363 = pneg %p108
        %p364 = scmp.lt.s32.totalorder %s26, 1
        %s365 = scalar_select %p364, %s26, 1
        %p366 = scmp.lt.s32.totalorder %s27, 0
        %s367 = scalar_select %p366, %s27, 0
        %s368 = sadd.s32 %s367, %s365
        %s369 = smul.addr %s368, 4
        %s370 = scalar_lea.vmem %s3, %s369
        %p371 = pneg %p139
        %p372 = pneg %p136
        %p373 = scmp.lt.s32.totalorder %s26, 1
        %s374 = scalar_select %p373, %s26, 1
        %p375 = scmp.lt.s32.totalorder %s27, 0
        %s376 = scalar_select %p375, %s27, 0
        %s377 = sadd.s32 %s376, %s374
        %s378 = smul.addr %s377, 4
        %s379 = scalar_lea.vmem %s4, %s378
        %p380 = pneg %p167
        %p381 = pneg %p164
        %p382 = pneg %p188
        %p383 = pneg %p185
        %p384 = pneg %p209
        %p385 = pneg %p206
        %p386 = pneg %p230
        %p387 = pneg %p227
        %p388 = pneg %p258
        %p389 = pneg %p255
        %s390 = sand.u32 %s245, 1
        %s391 = scalar_lea.sflag [#allocation3], %s390
        %s392 = sand.u32 %s245, 1
        %s393 = smul.addr %s392, 4
        %s394 = scalar_lea.vmem [#allocation2], %s393
        %p395 = scmp.lt.s32.totalorder %s26, 1
        %s396 = scalar_select %p395, %s26, 1
        %p397 = scmp.lt.s32.totalorder %s27, 0
        %s398 = scalar_select %p397, %s27, 0
        %s399 = sadd.s32 %s398, %s396
        %s400 = smul.addr %s399, 8
        %s401 = scalar_lea.vmem %s0, %s400
        %p402 = scmp.lt.s32.totalorder %s26, 1
        %s403 = scalar_select %p402, %s26, 1
        %p404 = scmp.lt.s32.totalorder %s27, 0
        %s405 = scalar_select %p404, %s27, 0
        %s406 = sadd.s32 %s405, %s403
        %s407 = smul.addr %s406, 4
        %s408 = scalar_lea.vmem %s1, %s407
        %p409 = scmp.lt.s32.totalorder %s26, 1
        %s410 = scalar_select %p409, %s26, 1
        %s411 = smul.addr %s410, 4
        %s412 = scalar_lea.vmem %s2, %s411
        %p413 = scmp.lt.s32.totalorder %s26, 1
        %s414 = scalar_select %p413, %s26, 1
        %p415 = scmp.lt.s32.totalorder %s27, 0
        %s416 = scalar_select %p415, %s27, 0
        %s417 = sadd.s32 %s416, %s414
        %s418 = smul.addr %s417, 4
        %s419 = scalar_lea.vmem %s3, %s418
        %p420 = scmp.lt.s32.totalorder %s26, 1
        %s421 = scalar_select %p420, %s26, 1
        %p422 = scmp.lt.s32.totalorder %s27, 0
        %s423 = scalar_select %p422, %s27, 0
        %s424 = sadd.s32 %s423, %s421
        %s425 = smul.addr %s424, 4
        %s426 = scalar_lea.vmem %s4, %s425
        %v427 = vld [vmem:[%s401] sm:$0xff]
        %v428 = vld [vmem:[%s408] sm:$0xf]
        %v429 = vld [vmem:[%s419] sm:$0xf]
        %v430 = vld [vmem:[%s426] sm:$0xf]
        %v431 = vld [vmem:[%s5] sm:$0xf]
        %v432 = vld [vmem:[%s7] sm:$0xf]
        %434 = vset.pattern.permute.xlu0 0
        %435 = vperm.xlu0 %434, %v432
        %v436 = vpop.permute.xlu0 %435
        %vm438 = vcmask 64512
        %v440 = vsel %vm438, %v431, 0
        %442 = vmatpush.msra.mxu0 0.0
        %443 = vmatpush.msra.mxu0 0.0
        %444 = vmatpush.msra.mxu0 0.0
        %445 = vmatpush.msra.mxu0 0.0
        %446 = vmatpush.msra.mxu0 0.0
        %447 = vmatpush.msra.mxu0 0.0
        %448 = vmatpush.msra.mxu0 0.0
        %449 = vmatpush.msra.mxu0 0.0
        %450 = vmatpush.msra.mxu0 0.0
        %451 = vmatpush.msra.mxu0 0.0
        %452 = vmatpush.msra.mxu0 0.0
        %453 = vmatpush.msra.mxu0 0.0
        %454 = vmatpush.msra.mxu0 0.0
        %455 = vmatpush.msra.mxu0 0.0
        %456 = vmatpush.msra.mxu0 0.0
        %457 = vmatpush.msra.mxu0 %v427
        %458 = vmatmul.f32.gmra.mxu0 %v440
        %v459 = vpop.f32.mrf.mxu0
        %v460 = vadd.f32 %v436, %v459
        %461 = vdwg.mxu0
        %463 = vrot.lane.b32.xlu0 %v428, 1
        %v464 = vpop.permute.xlu0 %463
        %vm466 = vcmask 7168
        %v467 = vsel %vm466, %v429, %v464
        %468 = vrot.lane.b32.xlu0 %v428, 127
        %v469 = vpop.permute.xlu0 %468
        %472 = vrot.lane.b32.xlu0 %v430, 15
        %v473 = vpop.permute.xlu0 %472
        %vm475 = vcmask 121856
        %v476 = vsel %vm475, %v469, %v473
        %v477 = vld [vmem:[%s6] sm:$0xf]
        %s478 = scalar_lea.vmem %s6, 4
        %v479 = vld [vmem:[%s478] sm:$0xf]
        %vm480 = vcmask 31744
        %v482 = vsel %vm480, %v479, 0
        %vm484 = vcmask 1043456
        %v485 = vsel %vm484, %v428, 0
        %487 = vmatpush.msra.mxu0 0.0
        %488 = vmatpush.msra.mxu0 0.0
        %489 = vmatpush.msra.mxu0 0.0
        %490 = vmatpush.msra.mxu0 0.0
        %491 = vmatpush.msra.mxu0 0.0
        %492 = vmatpush.msra.mxu0 0.0
        %493 = vmatpush.msra.mxu0 0.0
        %494 = vmatpush.msra.mxu0 0.0
        %495 = vmatpush.msra.mxu0 0.0
        %496 = vmatpush.msra.mxu0 0.0
        %497 = vmatpush.msra.mxu0 0.0
        %498 = vmatpush.msra.mxu0 0.0
        %499 = vmatpush.msra.mxu0 0.0
        %500 = vmatpush.msra.mxu0 0.0
        %501 = vmatpush.msra.mxu0 0.0
        %502 = vmatpush.msra.mxu0 %v485
        %503 = vmatmul.f32.gmra.mxu0 %v482
        %v504 = vpop.f32.mrf.mxu0
        %v505 = vadd.f32 0.0, %v504
        %506 = vdwg.mxu0
        %v508 = vsel %vm480, %v477, 0
        %v511 = vsel %vm484, %v467, 0
        %513 = vmatpush.msra.mxu0 0.0
        %514 = vmatpush.msra.mxu0 0.0
        %515 = vmatpush.msra.mxu0 0.0
        %516 = vmatpush.msra.mxu0 0.0
        %517 = vmatpush.msra.mxu0 0.0
        %518 = vmatpush.msra.mxu0 0.0
        %519 = vmatpush.msra.mxu0 0.0
        %520 = vmatpush.msra.mxu0 0.0
        %521 = vmatpush.msra.mxu0 0.0
        %522 = vmatpush.msra.mxu0 0.0
        %523 = vmatpush.msra.mxu0 0.0
        %524 = vmatpush.msra.mxu0 0.0
        %525 = vmatpush.msra.mxu0 0.0
        %526 = vmatpush.msra.mxu0 0.0
        %527 = vmatpush.msra.mxu0 0.0
        %528 = vmatpush.msra.mxu0 %v511
        %529 = vmatmul.f32.gmra.mxu0 %v508
        %v530 = vpop.f32.mrf.mxu0
        %v531 = vadd.f32 %v505, %v530
        %532 = vdwg.mxu0
        %s533 = scalar_lea.vmem %s6, 8
        %v534 = vld [vmem:[%s533] sm:$0xf]
        %v536 = vsel %vm480, %v534, 0
        %v539 = vsel %vm484, %v476, 0
        %541 = vmatpush.msra.mxu0 0.0
        %542 = vmatpush.msra.mxu0 0.0
        %543 = vmatpush.msra.mxu0 0.0
        %544 = vmatpush.msra.mxu0 0.0
        %545 = vmatpush.msra.mxu0 0.0
        %546 = vmatpush.msra.mxu0 0.0
        %547 = vmatpush.msra.mxu0 0.0
        %548 = vmatpush.msra.mxu0 0.0
        %549 = vmatpush.msra.mxu0 0.0
        %550 = vmatpush.msra.mxu0 0.0
        %551 = vmatpush.msra.mxu0 0.0
        %552 = vmatpush.msra.mxu0 0.0
        %553 = vmatpush.msra.mxu0 0.0
        %554 = vmatpush.msra.mxu0 0.0
        %555 = vmatpush.msra.mxu0 0.0
        %556 = vmatpush.msra.mxu0 %v539
        %557 = vmatmul.f32.gmra.mxu0 %v536
        %v558 = vpop.f32.mrf.mxu0
        %v559 = vadd.f32 0.0, %v558
        %560 = vdwg.mxu0
        %v561 = vadd.f32 %v531, %v559
        %562 = vset.pattern.permute.xlu0 1
        %563 = vperm.xlu0 %562, %v432
        %v564 = vpop.permute.xlu0 %563
        %v566 = vadd.f32 %v561, %v564
        %v567 = vld [vmem:[%s412] sm:$0xf]
        %569 = vset.pattern.permute.xlu0 0
        %570 = vperm.xlu0 %569, %v567
        %v571 = vpop.permute.xlu0 %570
        %v573 = vmul.f32 %v566, %v571
        %v574 = vadd.f32 %v460, %v573
        %v575 = vmax.f32 %v574, 0.0
        %vm576 = vcmask 125952
        %577 = vst.msk [vmem:[%s394] sm:$0xf] %vm576, %v575
        %s578 = sand.u32 %s245, 1
        %s579 = scalar_lea.sflag [#allocation3], %s578
        %s580 = sand.u32 %s245, 1
        %s581 = smul.addr %s580, 4
        %s582 = scalar_lea.vmem [#allocation2], %s581
        // Predicated region
        $region53: #{gca_forward.1} parent=51 // pred_check
          %p583 = pneg %p255
        $region54: #{gca_forward.1} parent=51 // pred_check_branch
          %585 = sbr.rel (%p583) target = $region56
        $region55: #{gca_forward.1} parent=51 // pred_region
          %587 = vsyncadd %s579, 0
          %s588 = sadd.s32 %s27, %s26
          %s589 = smul.addr %s588, 4
          %s590 = scalar_lea.hbm %s8, %s589
          %s592 = sshll.u32 %s582, 4
          %s593 = int_to_ptr.vmem [resolvable:$true] %s592
          %s594 = sshll.u32 %s590, 4
          %s595 = int_to_ptr.hbm [resolvable:$true] %s594
          %597 = dma.vmem_to_hbm [thread:$0]  %s593, 64, %s595, %s579
        $region56: #{gca_forward.1} parent=51 // pred_fallthru
          _
      $region52: #{gca_forward.1} parent=5 // pred_fallthru
        _
      %p598 = scmp.le.s32.totalorder 2, %s17
      // Predicated region
      $region57: #{gca_forward.1} parent=5 // pred_check
        %p599 = pneg %p598
      $region58: #{gca_forward.1} parent=5 // pred_check_branch
        %601 = sbr.rel (%p599) target = $region60
      $region59: #{gca_forward.1} parent=5 // pred_region
        %s602 = ssub.s32 %s17, 2
        // Predicated region
        $region61: #{gca_forward.1} parent=59 // pred_check
          %p603 = pneg %p261
        $region62: #{gca_forward.1} parent=59 // pred_check_branch
          %605 = sbr.rel (%p603) target = $region64
        $region63: #{gca_forward.1} parent=59 // pred_region
          %s606 = sand.u32 %s246, 1
          %s607 = scalar_lea.sflag [#allocation3], %s606
          %s608 = sand.u32 %s246, 1
          %s609 = smul.addr %s608, 4
          %s610 = scalar_lea.vmem [#allocation2], %s609
          %612 = dma.done %s607, 64
        $region64: #{gca_forward.1} parent=59 // pred_fallthru
          _
      $region60: #{gca_forward.1} parent=5 // pred_fallthru
        _
    $region6: #{gca_forward.1} parent=1 // loop_footer
      %s21 = sadd.s32 1, %s17
    $region7: #{gca_forward.1} parent=1 // loop_footer_branch
      %16 = sbr.rel target = $region3
    $region8: #{gca_forward.1} parent=1 // loop_exit
      _
    %613 = vsyncpa [#allocation3], 1
    %s614 = scalar_lea.sflag [#allocation3], 1
    %615 = vsyncpa %s614, 1

</llo_original>
